<compile_context>
chip_gen: v5e
topology: v5e:2x2
jax: 0.10.0
libtpu: 0.0.40
codegen_flags: <defaults>
</compile_context>

<pallas_src>
import jax
import jax.numpy as jnp
from jax.experimental import pallas as pl
from jax.experimental.pallas import tpu as pltpu

_LANE = 128
_SUBLANE_MULT = 32                      # safe second-minor multiple for f32/bf16/int8
_COL_CHOICES = (1024, 512, 256, 128)    # lane-dense column widths to try


def _ste_kernel(x_ref, o_ref):
    # One compare + one convert per vreg on the VPU; the kernel is HBM-bound.
    o_ref[...] = (x_ref[...] > 0).astype(o_ref.dtype)


def _tile_and_vmem():
    """Per-generation (row-tile byte budget, optional explicit VMEM limit)."""
    try:
        kind = jax.devices()[0].device_kind.lower()
    except Exception:   # be conservative if detection fails
        kind = ""
    if "v7" in kind:
        # ~3.2 TB/s HBM: bigger steps cut the fixed per-step overhead; 2x(8+8) MiB
        # of buffers needs an explicit scoped-VMEM limit above the 32 MiB default.
        return 8 << 20, 48 << 20
    # v5e / v6e (and unknown): 2 MiB tiles are ~85% of HBM roofline and keep the
    # double-buffered working set (2x(2+2) = 8 MiB) well under default limits.
    return 2 << 20, None


def _pick_cols(total):
    for c in _COL_CHOICES:
        if total % c == 0:
            return c
    return None


def _pick_tile_rows(rows, cols, tile_bytes):
    bytes_per_row = cols * 4                       # size the f32 (output) tile
    tile_r = (tile_bytes // bytes_per_row) // _SUBLANE_MULT * _SUBLANE_MULT
    tile_r = max(_SUBLANE_MULT, tile_r)
    if rows > tile_r:
        return tile_r
    # Whole slab fits a single tile: split into >=2 grid steps (when big enough)
    # so the parallel axis shards across v7x's two TensorCores. Harmless on
    # single-TC chips.
    if rows >= 2 * _SUBLANE_MULT:
        half = -(-rows // 2)
        return -(-half // _SUBLANE_MULT) * _SUBLANE_MULT
    return rows                                    # full-extent block (always legal)


def straight_through_estimator(x: jax.Array, *,
                               out_dtype=jnp.float32,
                               donate: bool = False) -> jax.Array:
    """Forward of StraightThroughEstimator: (x > 0).float(), elementwise."""
    orig_shape = x.shape
    total = int(x.size)
    if total == 0:
        return jnp.zeros(orig_shape, out_dtype)

    flat = x.reshape(-1)                           # free for contiguous layouts
    cols = _pick_cols(total)
    padded = 0
    if cols is None:
        # Rare ragged case: element count not a multiple of 128.
        cols = _LANE
        padded = -(-total // cols) * cols - total
        flat = jnp.pad(flat, (0, padded))

    rows = (total + padded) // cols
    tile_bytes, vmem_limit = _tile_and_vmem()
    tile_r = _pick_tile_rows(rows, cols, tile_bytes)
    grid = (pl.cdiv(rows, tile_r),)                # ragged trailing block is masked

    slab = flat.reshape(rows, cols)

    cp_kwargs = dict(dimension_semantics=("parallel",))
    if vmem_limit is not None:
        cp_kwargs["vmem_limit_bytes"] = vmem_limit

    call_kwargs = {}
    if donate and padded == 0 and x.dtype == jnp.dtype(out_dtype):
        # Reuse the input HBM buffer for the output (caller must not need x).
        call_kwargs["input_output_aliases"] = {0: 0}

    out = pl.pallas_call(
        _ste_kernel,
        out_shape=jax.ShapeDtypeStruct((rows, cols), out_dtype),
        grid=grid,
        in_specs=[pl.BlockSpec((tile_r, cols), lambda i: (i, 0))],
        out_specs=pl.BlockSpec((tile_r, cols), lambda i: (i, 0)),
        compiler_params=pltpu.CompilerParams(**cp_kwargs),
        **call_kwargs,
    )(slab)

    out_flat = out.reshape(-1)
    if padded:
        out_flat = out_flat[:total]
    return out_flat.reshape(orig_shape)


if __name__ == "__main__":
    key = jax.random.PRNGKey(0)

    # NCHW input, matching PyTorch conv-style layout: batch=2, channels=4, 16x16.
    x = jax.random.normal(key, (2, 4, 16, 16), dtype=jnp.float32)
    y = jax.block_until_ready(straight_through_estimator(x))
    ref = (x > 0).astype(jnp.float32)
    assert y.shape == x.shape
    assert y.dtype == jnp.float32
    assert bool(jnp.all(y == ref))

    # Ragged element count (exercises the fallback path, 3*5*7 = 105 elements).
    x2 = jax.random.normal(jax.random.PRNGKey(1), (3, 5, 7), dtype=jnp.float32)
    y2 = jax.block_until_ready(straight_through_estimator(x2))
    ref2 = (x2 > 0).astype(jnp.float32)
    assert y2.shape == x2.shape
    assert bool(jnp.all(y2 == ref2))

    print("KERNEL_OK")
</pallas_src>

<mosaic_0001>
module attributes {stable_mosaic.version = 11 : i64} {
  func.func @_ste_kernel(%arg0: i32, %arg1: memref<2x1024xf32, #tpu.memory_space<vmem>>, %arg2: memref<2x1024xf32, #tpu.memory_space<vmem>>) attributes {dimension_semantics = [#tpu.dimension_semantics<parallel>], iteration_bounds = array<i64: 1>, scalar_prefetch = 0 : i64, scratch_operands = 0 : i64, tpu.core_type = #tpu.core_type<tc>, window_params = [{transform_indices = @transform_0, window_bounds = array<i64: 2, 1024>}, {transform_indices = @transform_1, window_bounds = array<i64: 2, 1024>}]} {
    %c0 = arith.constant 0 : index
    %c0_0 = arith.constant 0 : index
    %0 = vector.load %arg1[%c0, %c0_0] : memref<2x1024xf32, #tpu.memory_space<vmem>>, vector<2x1024xf32>
    %cst = arith.constant 0.000000e+00 : f32
    %1 = vector.broadcast %cst : f32 to vector<2x1024xf32>
    %2 = arith.cmpf ogt, %0, %1 : vector<2x1024xf32>
    %3 = arith.extui %2 : vector<2x1024xi1> to vector<2x1024xi32>
    %4 = arith.sitofp %3 : vector<2x1024xi32> to vector<2x1024xf32>
    %c0_1 = arith.constant 0 : index
    %c0_2 = arith.constant 0 : index
    %5 = vector.load %arg2[%c0_1, %c0_2] : memref<2x1024xf32, #tpu.memory_space<vmem>>, vector<2x1024xf32>
    tpu.vector_store %arg2[%c0_1, %c0_2], %4 {strides = array<i32>} : memref<2x1024xf32, #tpu.memory_space<vmem>>, vector<2x1024xf32>,
    return
  }
  func.func @transform_0(%arg0: i32) -> (i32, i32) {
    %c0_i32 = arith.constant 0 : i32
    %c0_i32_0 = arith.constant 0 : i32
    return %arg0, %c0_i32 : i32, i32
  }
  func.func @transform_1(%arg0: i32) -> (i32, i32) {
    %c0_i32 = arith.constant 0 : i32
    %c0_i32_0 = arith.constant 0 : i32
    return %arg0, %c0_i32 : i32, i32
  }
}

</mosaic_0001>

<llo_original>
// kernel: tpu_custom_call.1
$region0: #{tpu_custom_call.1}
  #allocation0 [shape = 'u32[]', space=smem, size = 0x4, offset = 0x4, fixed_abs, tag = 'smem constant byte address 0x4 - core index']
  #allocation1 [shape = 'u32[72,128]{1,0:T(1,128)}', space=vmem, size = 0x9000, scoped, tag = 'internal scratch']
  %s0 = inlined_call_operand.hbm [shape: f32[2,1024], index: 0, kind: input, shape index: {}]
  %s1 = inlined_call_operand.hbm [shape: f32[2,1024], index: 1, kind: output, shape index: {}]
  %s2 = sld [smem:[#allocation0]]
  $region18: #{tpu_custom_call.1} parent=0
    _
  %s4 = ssub.s32 1, %s2
  %s5 = scalar_select 0, %s4, %s2
  $region1: #{tpu_custom_call.1} parent=0
    #allocation2 [shape = 'u8[8192]{0}', space=vmem, size = 0x2000, scoped, tag = 'input window, operand 0, single buffered']
    #allocation3 [shape = 's32[1]{0}', space=sflag, size = 0x4, scoped, tag = 'scoped memory for tpu_custom_call.1']
    #allocation4 [shape = 's32[1]{0}', space=sflag, size = 0x4, scoped, tag = 'scoped memory for tpu_custom_call.1']
    #allocation5 [shape = 'u8[8192]{0}', space=vmem, size = 0x2000, scoped, tag = 'output window, operand 0, single buffered']
    %6 = vsyncpa [#allocation3], 0
    %7 = vsyncpa [#allocation4], 0
    // Predicated region
    $region2: #{tpu_custom_call.1} parent=1 // pred_check
      _
    $region3: #{tpu_custom_call.1} parent=1 // pred_check_branch
      %9 = sbr.rel (0) target = $region5
    $region4: #{tpu_custom_call.1} parent=1 // pred_region
      %11 = vsyncadd [#allocation3], 0
      %s13 = sshll.u32 %s0, 4
      %s14 = int_to_ptr.hbm [resolvable:$true] %s13
      %s15 = sshll.u32 [#allocation2], 4
      %s16 = int_to_ptr.vmem [resolvable:$true] %s15
      %18 = dma.hbm_to_vmem [thread:$0]  %s14, 256, %s16, [#allocation3]
    $region5: #{tpu_custom_call.1} parent=1 // pred_fallthru
      _
    // Predicated region
    $region6: #{tpu_custom_call.1} parent=1 // pred_check
      _
    $region7: #{tpu_custom_call.1} parent=1 // pred_check_branch
      %20 = sbr.rel (0) target = $region9
    $region8: #{tpu_custom_call.1} parent=1 // pred_region
      %22 = dma.done [#allocation3], 256
    $region9: #{tpu_custom_call.1} parent=1 // pred_fallthru
      _
    %v23 = vld [vmem:[#allocation2] sm:$0xff]
    %v24 = vld [vmem:[#allocation2 + $0x8] sm:$0xff]
    %vm25 = vcmp.gt.f32.partialorder %v23, 0.0
    %vm26 = vcmp.gt.f32.partialorder %v24, 0.0
    %v27 = vsel %vm25, 1, 0
    %v28 = vsel %vm26, 1, 0
    %v29 = vcvt.s32.f32 %v27
    %v30 = vcvt.s32.f32 %v28
    %31 = vst [vmem:[#allocation5] sm:$0xff] %v29
    %32 = vst [vmem:[#allocation5 + $0x8] sm:$0xff] %v30
    // Predicated region
    $region10: #{tpu_custom_call.1} parent=1 // pred_check
      _
    $region11: #{tpu_custom_call.1} parent=1 // pred_check_branch
      %34 = sbr.rel (0) target = $region13
    $region12: #{tpu_custom_call.1} parent=1 // pred_region
      %36 = vsyncadd [#allocation4], 0
      %s38 = sshll.u32 [#allocation5], 4
      %s39 = int_to_ptr.vmem [resolvable:$true] %s38
      %s40 = sshll.u32 %s1, 4
      %s41 = int_to_ptr.hbm [resolvable:$true] %s40
      %43 = dma.vmem_to_hbm [thread:$0]  %s39, 256, %s41, [#allocation4]
    $region13: #{tpu_custom_call.1} parent=1 // pred_fallthru
      _
    // Predicated region
    $region14: #{tpu_custom_call.1} parent=1 // pred_check
      _
    $region15: #{tpu_custom_call.1} parent=1 // pred_check_branch
      %45 = sbr.rel (0) target = $region17
    $region16: #{tpu_custom_call.1} parent=1 // pred_region
      %47 = dma.done [#allocation4], 256
    $region17: #{tpu_custom_call.1} parent=1 // pred_fallthru
      _
    %48 = vsyncpa [#allocation3], 1
    %49 = vsyncpa [#allocation4], 1

</llo_original>
